<compile_context>
chip_gen: v7x
topology: tpu7x:2x2x1
jax: 0.10.0
libtpu: 0.0.40
codegen_flags: <defaults>
</compile_context>

<pallas_src>
import jax
import jax.numpy as jnp
from jax.experimental import pallas as pl
from jax.experimental.pallas import tpu as pltpu


def attention_kernel(vflat_ref, q_ref, w1v_ref, w1q_ref, b1_ref, w2_ref, out_ref):
    # vflat_ref: (TB*K, Vd)   q_ref: (TB, Qd)
    # w1v_ref:   (Vd, H)      w1q_ref: (Qd, H)   b1_ref: (1, H)   w2_ref: (1, H)
    # out_ref:   (TB, K)      (lane-dense: K on lanes, batch rows on sublanes)
    TB, K = out_ref.shape
    H = w1v_ref.shape[-1]

    # v-projection for all TB*K rows at once: one big MXU matmul per grid step.
    vproj = jnp.dot(vflat_ref[...], w1v_ref[...],
                    preferred_element_type=jnp.float32)            # (TB*K, H)

    # q-projection once per batch row, with b1 folded in (broadcast over K below).
    qproj = jnp.dot(q_ref[...], w1q_ref[...],
                    preferred_element_type=jnp.float32) + b1_ref[...]   # (TB, H)

    # joint_repr = ReLU(concat(v, q) @ W1 + b1)
    joint = vproj.reshape(TB, K, H) + qproj[:, None, :]             # (TB, K, H)
    joint = jnp.maximum(joint, 0.0)

    # logits = joint @ w2^T  -> lane-dense (TB, K).
    # (b2 omitted: softmax over K is invariant to a uniform shift.)
    logits = jnp.sum(joint * w2_ref[...], axis=-1)                  # (TB, K)

    # softmax over the K objects (lane axis)
    m = jnp.max(logits, axis=-1, keepdims=True)
    e = jnp.exp(logits - m)
    w = e / jnp.sum(e, axis=-1, keepdims=True)

    out_ref[...] = w.astype(out_ref.dtype)


def _pick_block_batch(B, K, target_rows=256):
    """Pick TB (batches per grid step) so TB*K gives the MXU >= ~target_rows rows,
    TB divides B, and block sublane dims stay legal (TB == B or TB % 8 == 0)."""
    want = max(1, -(-target_rows // K))     # cdiv(target_rows, K)
    if want >= B:
        return B
    for tb in range(min(B, want), 0, -1):
        if B % tb == 0 and (tb == B or tb % 8 == 0):
            return tb
    return B


def attention_forward(v, q, w1v, w1q, b1, w2row, b2=None, *, block_batch=None):
    # b2 is intentionally unused: softmax is shift-invariant, so +b2 has no effect.
    B, K, VD = v.shape
    QD = q.shape[-1]
    H = w1v.shape[-1]

    TB = block_batch if block_batch is not None else _pick_block_batch(B, K)
    assert B % TB == 0, (B, TB)

    vflat = v.reshape(B * K, VD)       # free XLA reshape; kernel sees 2-D tiles
    b1_2 = b1.reshape(1, H)
    w2_2 = w2row.reshape(1, H)

    out = pl.pallas_call(
        attention_kernel,
        out_shape=jax.ShapeDtypeStruct((B, K), jnp.float32),
        grid_spec=pltpu.PrefetchScalarGridSpec(
            num_scalar_prefetch=0,
            grid=(B // TB,),
            in_specs=[
                pl.BlockSpec((TB * K, VD), lambda b: (b, 0)),
                pl.BlockSpec((TB, QD), lambda b: (b, 0)),
                pl.BlockSpec((VD, H), lambda b: (0, 0)),
                pl.BlockSpec((QD, H), lambda b: (0, 0)),
                pl.BlockSpec((1, H), lambda b: (0, 0)),
                pl.BlockSpec((1, H), lambda b: (0, 0)),
            ],
            out_specs=pl.BlockSpec((TB, K), lambda b: (b, 0)),
        ),
        compiler_params=pltpu.CompilerParams(
            dimension_semantics=("parallel",)),
    )(vflat, q, w1v, w1q, b1_2, w2_2)

    return out.reshape(B, K, 1)


def weight_norm_effective(v_w, g):
    # PyTorch weight_norm(dim=None): W = g * v / ||v||_F  (scalar g)
    return g * v_w / jnp.sqrt(jnp.sum(v_w * v_w))


def reference_forward(v, q, w1v, w1q, b1, w2row, b2):
    joint = jnp.einsum("bkv,vh->bkh", v, w1v) + jnp.einsum("bq,qh->bh", q, w1q)[:, None, :]
    joint = jnp.maximum(joint + b1[None, None, :], 0.0)
    logits = jnp.sum(joint * w2row.reshape(-1)[None, None, :], axis=-1, keepdims=True) + b2
    return jax.nn.softmax(logits, axis=1)


if __name__ == "__main__":
    B, K, VDIM, QDIM, HID = 2, 8, 16, 16, 32
    DIN = VDIM + QDIM

    key = jax.random.PRNGKey(0)
    ks = jax.random.split(key, 8)

    # inputs
    v = jax.random.normal(ks[0], (B, K, VDIM), jnp.float32)
    q = jax.random.normal(ks[1], (B, QDIM), jnp.float32)

    # FCNet linear (weight_norm, dim=None): torch weight shape (HID, DIN)
    w1_raw = jax.random.normal(ks[2], (HID, DIN), jnp.float32) * 0.1
    g1 = jnp.sqrt(jnp.sum(w1_raw * w1_raw))            # PyTorch init: g = ||v||_F
    w1_eff = weight_norm_effective(w1_raw, g1).T       # (DIN, HID), stored (in, out)
    b1 = jax.random.normal(ks[3], (HID,), jnp.float32) * 0.05

    # output linear (weight_norm, dim=None): torch weight shape (1, HID)
    w2_raw = jax.random.normal(ks[4], (1, HID), jnp.float32) * 0.1
    g2 = jnp.sqrt(jnp.sum(w2_raw * w2_raw))
    w2_eff = weight_norm_effective(w2_raw, g2)          # (1, HID)
    b2 = jax.random.normal(ks[5], (1,), jnp.float32) * 0.05

    # split W1 into the v-part and q-part of the (implicit) concat
    w1v = w1_eff[:VDIM, :]   # (VDIM, HID)
    w1q = w1_eff[VDIM:, :]   # (QDIM, HID)

    out = attention_forward(v, q, w1v, w1q, b1, w2_eff, b2)
    out = jax.block_until_ready(out)

    ref = reference_forward(v, q, w1v, w1q, b1, w2_eff, b2)
    assert out.shape == (B, K, 1)
    assert jnp.allclose(out, ref, atol=1e-5, rtol=1e-5)
    assert jnp.allclose(jnp.sum(out, axis=1), 1.0, atol=1e-5)

    print("KERNEL_OK")
</pallas_src>

<mosaic_0001>
module attributes {stable_mosaic.version = 11 : i64} {
  func.func @attention_kernel(%arg0: i32, %arg1: memref<16x16xf32, #tpu.memory_space<vmem>>, %arg2: memref<2x16xf32, #tpu.memory_space<vmem>>, %arg3: memref<16x32xf32, #tpu.memory_space<vmem>>, %arg4: memref<16x32xf32, #tpu.memory_space<vmem>>, %arg5: memref<1x32xf32, #tpu.memory_space<vmem>>, %arg6: memref<1x32xf32, #tpu.memory_space<vmem>>, %arg7: memref<2x8xf32, #tpu.memory_space<vmem>>) attributes {dimension_semantics = [#tpu.dimension_semantics<parallel>], iteration_bounds = array<i64: 1>, scalar_prefetch = 0 : i64, scratch_operands = 0 : i64, tpu.core_type = #tpu.core_type<tc>, window_params = [{transform_indices = @transform_0, window_bounds = array<i64: 16, 16>}, {transform_indices = @transform_1, window_bounds = array<i64: 2, 16>}, {pipeline_mode = #tpu.pipeline_mode<synchronous>, transform_indices = @transform_2, window_bounds = array<i64: 16, 32>}, {pipeline_mode = #tpu.pipeline_mode<synchronous>, transform_indices = @transform_3, window_bounds = array<i64: 16, 32>}, {pipeline_mode = #tpu.pipeline_mode<synchronous>, transform_indices = @transform_4, window_bounds = array<i64: 1, 32>}, {pipeline_mode = #tpu.pipeline_mode<synchronous>, transform_indices = @transform_5, window_bounds = array<i64: 1, 32>}, {transform_indices = @transform_6, window_bounds = array<i64: 2, 8>}]} {
    %c0 = arith.constant 0 : index
    %c0_0 = arith.constant 0 : index
    %0 = vector.load %arg1[%c0, %c0_0] : memref<16x16xf32, #tpu.memory_space<vmem>>, vector<16x16xf32>
    %c0_1 = arith.constant 0 : index
    %c0_2 = arith.constant 0 : index
    %1 = vector.load %arg3[%c0_1, %c0_2] : memref<16x32xf32, #tpu.memory_space<vmem>>, vector<16x32xf32>
    %cst = arith.constant dense<0.000000e+00> : vector<16x32xf32>
    %2 = tpu.matmul %0, %1, %cst {dimension_numbers = #tpu.dot_dimension_numbers<[1], [0], [0], [1], [0, 0, 1, 1], [], []>} : vector<16x16xf32>, vector<16x32xf32>, vector<16x32xf32> -> vector<16x32xf32>
    %c0_3 = arith.constant 0 : index
    %c0_4 = arith.constant 0 : index
    %3 = vector.load %arg2[%c0_3, %c0_4] : memref<2x16xf32, #tpu.memory_space<vmem>>, vector<2x16xf32>
    %c0_5 = arith.constant 0 : index
    %c0_6 = arith.constant 0 : index
    %4 = vector.load %arg4[%c0_5, %c0_6] : memref<16x32xf32, #tpu.memory_space<vmem>>, vector<16x32xf32>
    %cst_7 = arith.constant dense<0.000000e+00> : vector<2x32xf32>
    %5 = tpu.matmul %3, %4, %cst_7 {dimension_numbers = #tpu.dot_dimension_numbers<[1], [0], [0], [1], [0, 0, 1, 1], [], []>} : vector<2x16xf32>, vector<16x32xf32>, vector<2x32xf32> -> vector<2x32xf32>
    %c0_8 = arith.constant 0 : index
    %c0_9 = arith.constant 0 : index
    %6 = vector.load %arg5[%c0_8, %c0_9] : memref<1x32xf32, #tpu.memory_space<vmem>>, vector<1x32xf32>
    %7 = vector.broadcast %6 : vector<1x32xf32> to vector<2x32xf32>
    %8 = arith.addf %5, %7 : vector<2x32xf32>
    %9 = vector.shape_cast %2 : vector<16x32xf32> to vector<2x8x32xf32>
    %10 = vector.shape_cast %8 : vector<2x32xf32> to vector<2x1x32xf32>
    %11 = vector.broadcast %10 : vector<2x1x32xf32> to vector<2x8x32xf32>
    %12 = arith.addf %9, %11 : vector<2x8x32xf32>
    %cst_10 = arith.constant 0.000000e+00 : f32
    %13 = vector.broadcast %cst_10 : f32 to vector<2x8x32xf32>
    %14 = arith.maximumf %12, %13 : vector<2x8x32xf32>
    %c0_11 = arith.constant 0 : index
    %c0_12 = arith.constant 0 : index
    %15 = vector.load %arg6[%c0_11, %c0_12] : memref<1x32xf32, #tpu.memory_space<vmem>>, vector<1x32xf32>
    %16 = vector.shape_cast %15 : vector<1x32xf32> to vector<1x1x32xf32>
    %17 = vector.broadcast %16 : vector<1x1x32xf32> to vector<2x8x32xf32>
    %18 = arith.mulf %14, %17 : vector<2x8x32xf32>
    %cst_13 = arith.constant dense<0.000000e+00> : vector<2x8xf32>
    %19 = vector.multi_reduction <add>, %18, %cst_13 [2] : vector<2x8x32xf32> to vector<2x8xf32>
    %cst_14 = arith.constant dense<0xFF800000> : vector<2xf32>
    %20 = vector.multi_reduction <maximumf>, %19, %cst_14 [1] : vector<2x8xf32> to vector<2xf32>
    %21 = vector.shape_cast %20 : vector<2xf32> to vector<2x1xf32>
    %22 = vector.broadcast %21 : vector<2x1xf32> to vector<2x8xf32>
    %23 = arith.subf %19, %22 : vector<2x8xf32>
    %24 = math.exp %23 : vector<2x8xf32>
    %cst_15 = arith.constant dense<0.000000e+00> : vector<2xf32>
    %25 = vector.multi_reduction <add>, %24, %cst_15 [1] : vector<2x8xf32> to vector<2xf32>
    %26 = vector.shape_cast %25 : vector<2xf32> to vector<2x1xf32>
    %27 = vector.broadcast %26 : vector<2x1xf32> to vector<2x8xf32>
    %28 = arith.divf %24, %27 : vector<2x8xf32>
    %c0_16 = arith.constant 0 : index
    %c0_17 = arith.constant 0 : index
    %29 = vector.load %arg7[%c0_16, %c0_17] : memref<2x8xf32, #tpu.memory_space<vmem>>, vector<2x8xf32>
    tpu.vector_store %arg7[%c0_16, %c0_17], %28 {strides = array<i32>} : memref<2x8xf32, #tpu.memory_space<vmem>>, vector<2x8xf32>,
    return
  }
  func.func @transform_0(%arg0: i32) -> (i32, i32) {
    %c0_i32 = arith.constant 0 : i32
    %c0_i32_0 = arith.constant 0 : i32
    return %arg0, %c0_i32 : i32, i32
  }
  func.func @transform_1(%arg0: i32) -> (i32, i32) {
    %c0_i32 = arith.constant 0 : i32
    %c0_i32_0 = arith.constant 0 : i32
    return %arg0, %c0_i32 : i32, i32
  }
  func.func @transform_2(%arg0: i32) -> (i32, i32) {
    %c0_i32 = arith.constant 0 : i32
    %c0_i32_0 = arith.constant 0 : i32
    %c0_i32_1 = arith.constant 0 : i32
    return %c0_i32, %c0_i32_0 : i32, i32
  }
  func.func @transform_3(%arg0: i32) -> (i32, i32) {
    %c0_i32 = arith.constant 0 : i32
    %c0_i32_0 = arith.constant 0 : i32
    %c0_i32_1 = arith.constant 0 : i32
    return %c0_i32, %c0_i32_0 : i32, i32
  }
  func.func @transform_4(%arg0: i32) -> (i32, i32) {
    %c0_i32 = arith.constant 0 : i32
    %c0_i32_0 = arith.constant 0 : i32
    %c0_i32_1 = arith.constant 0 : i32
    return %c0_i32, %c0_i32_0 : i32, i32
  }
  func.func @transform_5(%arg0: i32) -> (i32, i32) {
    %c0_i32 = arith.constant 0 : i32
    %c0_i32_0 = arith.constant 0 : i32
    %c0_i32_1 = arith.constant 0 : i32
    return %c0_i32, %c0_i32_0 : i32, i32
  }
  func.func @transform_6(%arg0: i32) -> (i32, i32) {
    %c0_i32 = arith.constant 0 : i32
    %c0_i32_0 = arith.constant 0 : i32
    return %arg0, %c0_i32 : i32, i32
  }
}

</mosaic_0001>

<llo_original>
// kernel: tpu_custom_call.1
$region0: #{tpu_custom_call.1}
  #allocation0 [shape = 'u32[]', space=smem, size = 0x4, offset = 0x4, fixed_abs, tag = 'smem constant byte address 0x4 - core index']
  #allocation1 [shape = 'u32[144,128]{1,0:T(1,128)}', space=vmem, size = 0x12000, scoped, tag = 'internal scratch']
  %s0 = inlined_call_operand.hbm [shape: f32[16,16], index: 0, kind: input, shape index: {}]
  %s1 = inlined_call_operand.vmem [shape: f32[2,16], index: 1, kind: input, shape index: {}]
  %s2 = inlined_call_operand.hbm [shape: f32[16,32], index: 2, kind: input, shape index: {}]
  %s3 = inlined_call_operand.hbm [shape: f32[16,32], index: 3, kind: input, shape index: {}]
  %s4 = inlined_call_operand.vmem [shape: f32[1,32], index: 4, kind: input, shape index: {}]
  %s5 = inlined_call_operand.vmem [shape: f32[1,32], index: 5, kind: input, shape index: {}]
  %s6 = inlined_call_operand.hbm [shape: f32[2,8], index: 6, kind: output, shape index: {}]
  %s7 = sld [smem:[#allocation0]]
  $region46: #{tpu_custom_call.1} parent=0
    _
  %s9 = ssub.s32 1, %s7
  %s10 = scalar_select 0, %s9, %s7
  $region1: #{tpu_custom_call.1} parent=0
    #allocation2 [shape = 'u8[8192]{0}', space=vmem, size = 0x2000, scoped, tag = 'input window, operand 0, single buffered']
    #allocation3 [shape = 's32[1]{0}', space=sflag, size = 0x4, scoped, tag = 'scoped memory for tpu_custom_call.1']
    #allocation4 [shape = 's32[1]{0}', space=sflag, size = 0x4, scoped, tag = 'scoped memory for tpu_custom_call.1']
    #allocation5 [shape = 'u8[8192]{0}', space=vmem, size = 0x2000, scoped, tag = 'input window, operand 2, single buffered']
    #allocation6 [shape = 's32[1]{0}', space=sflag, size = 0x4, scoped, tag = 'scoped memory for tpu_custom_call.1']
    #allocation7 [shape = 'u8[8192]{0}', space=vmem, size = 0x2000, scoped, tag = 'input window, operand 3, single buffered']
    #allocation8 [shape = 'u8[1024]{0}', space=vmem, size = 0x400, scoped, tag = 'output window, operand 0, single buffered']
    %11 = vsyncpa [#allocation3], 0
    %12 = vsyncpa [#allocation6], 0
    %13 = vsyncpa [#allocation4], 0
    // Predicated region
    $region2: #{tpu_custom_call.1} parent=1 // pred_check
      _
    $region3: #{tpu_custom_call.1} parent=1 // pred_check_branch
      %15 = sbr.rel (0) target = $region5
    $region4: #{tpu_custom_call.1} parent=1 // pred_region
      %s17 = ssub.s32 256, 256
      %18 = vsyncadd [#allocation3], %s17
      %s19 = sshll.u32 [#allocation2], 4
      %s20 = int_to_ptr.vmem [resolvable:$true] %s19
      %25 = dma.hbm_to_vmem [thread:$0]  %s0, 256, %s20, [#allocation3], 128, 128, 8
    $region5: #{tpu_custom_call.1} parent=1 // pred_fallthru
      _
    // Predicated region
    $region6: #{tpu_custom_call.1} parent=1 // pred_check
      _
    $region7: #{tpu_custom_call.1} parent=1 // pred_check_branch
      %27 = sbr.rel (0) target = $region9
    $region8: #{tpu_custom_call.1} parent=1 // pred_region
      _
    $region9: #{tpu_custom_call.1} parent=1 // pred_fallthru
      _
    // Predicated region
    $region10: #{tpu_custom_call.1} parent=1 // pred_check
      _
    $region11: #{tpu_custom_call.1} parent=1 // pred_check_branch
      %29 = sbr.rel (0) target = $region13
    $region12: #{tpu_custom_call.1} parent=1 // pred_region
      %s31 = ssub.s32 256, 256
      %32 = vsyncadd [#allocation6], %s31
      %s33 = sshll.u32 [#allocation5], 4
      %s34 = int_to_ptr.vmem [resolvable:$true] %s33
      %39 = dma.hbm_to_vmem [thread:$0]  %s2, 256, %s34, [#allocation6], 128, 128, 8
    $region13: #{tpu_custom_call.1} parent=1 // pred_fallthru
      _
    // Predicated region
    $region14: #{tpu_custom_call.1} parent=1 // pred_check
      _
    $region15: #{tpu_custom_call.1} parent=1 // pred_check_branch
      %41 = sbr.rel (0) target = $region17
    $region16: #{tpu_custom_call.1} parent=1 // pred_region
      %s43 = ssub.s32 256, 256
      %44 = vsyncadd [#allocation6], %s43
      %s45 = sshll.u32 [#allocation7], 4
      %s46 = int_to_ptr.vmem [resolvable:$true] %s45
      %51 = dma.hbm_to_vmem [thread:$0]  %s3, 256, %s46, [#allocation6], 128, 128, 8
    $region17: #{tpu_custom_call.1} parent=1 // pred_fallthru
      _
    // Predicated region
    $region18: #{tpu_custom_call.1} parent=1 // pred_check
      _
    $region19: #{tpu_custom_call.1} parent=1 // pred_check_branch
      %53 = sbr.rel (0) target = $region21
    $region20: #{tpu_custom_call.1} parent=1 // pred_region
      _
    $region21: #{tpu_custom_call.1} parent=1 // pred_fallthru
      _
    // Predicated region
    $region22: #{tpu_custom_call.1} parent=1 // pred_check
      _
    $region23: #{tpu_custom_call.1} parent=1 // pred_check_branch
      %55 = sbr.rel (0) target = $region25
    $region24: #{tpu_custom_call.1} parent=1 // pred_region
      _
    $region25: #{tpu_custom_call.1} parent=1 // pred_fallthru
      _
    // Predicated region
    $region26: #{tpu_custom_call.1} parent=1 // pred_check
      _
    $region27: #{tpu_custom_call.1} parent=1 // pred_check_branch
      %57 = sbr.rel (0) target = $region29
    $region28: #{tpu_custom_call.1} parent=1 // pred_region
      %58 = dma.done [#allocation3], 256
    $region29: #{tpu_custom_call.1} parent=1 // pred_fallthru
      _
    // Predicated region
    $region30: #{tpu_custom_call.1} parent=1 // pred_check
      _
    $region31: #{tpu_custom_call.1} parent=1 // pred_check_branch
      %60 = sbr.rel (0) target = $region33
    $region32: #{tpu_custom_call.1} parent=1 // pred_region
      %61 = dma.done [#allocation6], 256
    $region33: #{tpu_custom_call.1} parent=1 // pred_fallthru
      _
    // Predicated region
    $region34: #{tpu_custom_call.1} parent=1 // pred_check
      _
    $region35: #{tpu_custom_call.1} parent=1 // pred_check_branch
      %63 = sbr.rel (0) target = $region37
    $region36: #{tpu_custom_call.1} parent=1 // pred_region
      %64 = dma.done [#allocation6], 256
    $region37: #{tpu_custom_call.1} parent=1 // pred_fallthru
      _
    %v65 = vld [vmem:[#allocation2] sm:$0xff]
    %v66 = vld [vmem:[#allocation2 + $0x8] sm:$0xff]
    %v67 = vld [vmem:[#allocation5] sm:$0xff]
    %v68 = vld [vmem:[#allocation5 + $0x8] sm:$0xff]
    %vm69 = vcmask 130048
    %v71 = vsel %vm69, %v65, 0
    %v74 = vsel %vm69, %v66, 0
    %76 = vmatprep.subr.mxu0 0.0
    %77 = vmatpush1.msra.mxu0 %v67
    %78 = vmatprep.subr.mxu0 0.0
    %79 = vmatpush1.msra.mxu0 %v68
    %80 = vmatprep.subr.mxu0 0.0
    %81 = vmatpush1.msra.mxu0 0.0
    %82 = vmatprep.subr.mxu0 0.0
    %83 = vmatpush1.msra.mxu0 0.0
    %84 = vmatprep.subr.mxu0 0.0
    %85 = vmatpush1.msra.mxu0 0.0
    %86 = vmatprep.subr.mxu0 0.0
    %87 = vmatpush1.msra.mxu0 0.0
    %88 = vmatprep.subr.mxu0 0.0
    %89 = vmatpush1.msra.mxu0 0.0
    %90 = vmatprep.subr.mxu0 0.0
    %91 = vmatpush1.msra.mxu0 0.0
    %92 = vmatprep.subr.mxu0 0.0
    %93 = vmatpush1.msra.mxu0 0.0
    %94 = vmatprep.subr.mxu0 0.0
    %95 = vmatpush1.msra.mxu0 0.0
    %96 = vmatprep.subr.mxu0 0.0
    %97 = vmatpush1.msra.mxu0 0.0
    %98 = vmatprep.subr.mxu0 0.0
    %99 = vmatpush1.msra.mxu0 0.0
    %100 = vmatprep.subr.mxu0 0.0
    %101 = vmatpush1.msra.mxu0 0.0
    %102 = vmatprep.subr.mxu0 0.0
    %103 = vmatpush1.msra.mxu0 0.0
    %104 = vmatprep.subr.mxu0 0.0
    %105 = vmatpush1.msra.mxu0 0.0
    %106 = vmatprep.subr.mxu0 0.0
    %107 = vmatpush1.msra.mxu0 0.0
    %108 = vmatprep.subr.mxu0 0.0
    %109 = vmatpush1.msra.mxu0 0.0
    %110 = vmatprep.subr.mxu0 0.0
    %111 = vmatpush1.msra.mxu0 0.0
    %112 = vmatprep.subr.mxu0 0.0
    %113 = vmatpush1.msra.mxu0 0.0
    %114 = vmatprep.subr.mxu0 0.0
    %115 = vmatpush1.msra.mxu0 0.0
    %116 = vmatprep.subr.mxu0 0.0
    %117 = vmatpush1.msra.mxu0 0.0
    %118 = vmatprep.subr.mxu0 0.0
    %119 = vmatpush1.msra.mxu0 0.0
    %120 = vmatprep.subr.mxu0 0.0
    %121 = vmatpush1.msra.mxu0 0.0
    %122 = vmatprep.subr.mxu0 0.0
    %123 = vmatpush1.msra.mxu0 0.0
    %124 = vmatprep.subr.mxu0 0.0
    %125 = vmatpush1.msra.mxu0 0.0
    %126 = vmatprep.subr.mxu0 0.0
    %127 = vmatpush1.msra.mxu0 0.0
    %128 = vmatprep.subr.mxu0 0.0
    %129 = vmatpush1.msra.mxu0 0.0
    %130 = vmatprep.subr.mxu0 0.0
    %131 = vmatpush1.msra.mxu0 0.0
    %132 = vmatprep.subr.mxu0 0.0
    %133 = vmatpush1.msra.mxu0 0.0
    %134 = vmatprep.subr.mxu0 0.0
    %135 = vmatpush1.msra.mxu0 0.0
    %136 = vmatprep.subr.mxu0 0.0
    %137 = vmatpush1.msra.mxu0 0.0
    %138 = vmatprep.subr.mxu0 0.0
    %139 = vmatpush1.msra.mxu0 0.0
    %140 = vmatprep.mubr.f32.mxu0 0.0
    %141 = vmatmul.mubr.f32.gmra.mrb[0].mxu0 %v71
    %v142 = vpop.f32.mrb[0].mxu0
    %v143 = vadd.f32 0.0, %v142
    %v144 = vpop.f32.mrb[0].mxu0
    %145 = vmatprep.mubr.f32.mxu0 0.0
    %146 = vmatmul.mubr.f32.gmra.mrb[0].mxu0 %v74
    %v147 = vpop.f32.mrb[0].mxu0
    %v148 = vadd.f32 0.0, %v147
    %v149 = vpop.f32.mrb[0].mxu0
    %150 = vdwg.mxu0
    %v151 = vld [vmem:[%s1] sm:$0x3]
    %v152 = vld [vmem:[#allocation7] sm:$0xff]
    %v153 = vld [vmem:[#allocation7 + $0x8] sm:$0xff]
    %v154 = vld [vmem:[%s4] sm:$0x1]
    %v156 = vlaneseq
    %v157 = vshrl.u32 %v156, 7
    %v158 = vsub.s32 0, %v157
    %v159 = vrot.slane %v154, %v158
    %v162 = vsel %vm69, %v151, 0
    %164 = vmatprep.subr.mxu0 0.0
    %165 = vmatpush1.msra.mxu0 %v152
    %166 = vmatprep.subr.mxu0 0.0
    %167 = vmatpush1.msra.mxu0 %v153
    %168 = vmatprep.subr.mxu0 0.0
    %169 = vmatpush1.msra.mxu0 0.0
    %170 = vmatprep.subr.mxu0 0.0
    %171 = vmatpush1.msra.mxu0 0.0
    %172 = vmatprep.subr.mxu0 0.0
    %173 = vmatpush1.msra.mxu0 0.0
    %174 = vmatprep.subr.mxu0 0.0
    %175 = vmatpush1.msra.mxu0 0.0
    %176 = vmatprep.subr.mxu0 0.0
    %177 = vmatpush1.msra.mxu0 0.0
    %178 = vmatprep.subr.mxu0 0.0
    %179 = vmatpush1.msra.mxu0 0.0
    %180 = vmatprep.subr.mxu0 0.0
    %181 = vmatpush1.msra.mxu0 0.0
    %182 = vmatprep.subr.mxu0 0.0
    %183 = vmatpush1.msra.mxu0 0.0
    %184 = vmatprep.subr.mxu0 0.0
    %185 = vmatpush1.msra.mxu0 0.0
    %186 = vmatprep.subr.mxu0 0.0
    %187 = vmatpush1.msra.mxu0 0.0
    %188 = vmatprep.subr.mxu0 0.0
    %189 = vmatpush1.msra.mxu0 0.0
    %190 = vmatprep.subr.mxu0 0.0
    %191 = vmatpush1.msra.mxu0 0.0
    %192 = vmatprep.subr.mxu0 0.0
    %193 = vmatpush1.msra.mxu0 0.0
    %194 = vmatprep.subr.mxu0 0.0
    %195 = vmatpush1.msra.mxu0 0.0
    %196 = vmatprep.subr.mxu0 0.0
    %197 = vmatpush1.msra.mxu0 0.0
    %198 = vmatprep.subr.mxu0 0.0
    %199 = vmatpush1.msra.mxu0 0.0
    %200 = vmatprep.subr.mxu0 0.0
    %201 = vmatpush1.msra.mxu0 0.0
    %202 = vmatprep.subr.mxu0 0.0
    %203 = vmatpush1.msra.mxu0 0.0
    %204 = vmatprep.subr.mxu0 0.0
    %205 = vmatpush1.msra.mxu0 0.0
    %206 = vmatprep.subr.mxu0 0.0
    %207 = vmatpush1.msra.mxu0 0.0
    %208 = vmatprep.subr.mxu0 0.0
    %209 = vmatpush1.msra.mxu0 0.0
    %210 = vmatprep.subr.mxu0 0.0
    %211 = vmatpush1.msra.mxu0 0.0
    %212 = vmatprep.subr.mxu0 0.0
    %213 = vmatpush1.msra.mxu0 0.0
    %214 = vmatprep.subr.mxu0 0.0
    %215 = vmatpush1.msra.mxu0 0.0
    %216 = vmatprep.subr.mxu0 0.0
    %217 = vmatpush1.msra.mxu0 0.0
    %218 = vmatprep.subr.mxu0 0.0
    %219 = vmatpush1.msra.mxu0 0.0
    %220 = vmatprep.subr.mxu0 0.0
    %221 = vmatpush1.msra.mxu0 0.0
    %222 = vmatprep.subr.mxu0 0.0
    %223 = vmatpush1.msra.mxu0 0.0
    %224 = vmatprep.subr.mxu0 0.0
    %225 = vmatpush1.msra.mxu0 0.0
    %226 = vmatprep.subr.mxu0 0.0
    %227 = vmatpush1.msra.mxu0 0.0
    %228 = vmatprep.mubr.f32.mxu0 0.0
    %229 = vmatmul.mubr.f32.gmra.mrb[0].mxu0 %v162
    %v230 = vpop.f32.mrb[0].mxu0
    %v231 = vadd.f32 %v159, %v230
    %v232 = vpop.f32.mrb[0].mxu0
    %233 = vdwg.mxu0
    %v236 = vunpack.c.l.s4 1966171168
    %v237 = vunpack.c.0.s8 %v236
    %v238 = vlaneseq
    %v239 = vshrl.u32 %v238, 7
    %v240 = vsub.s32 %v237, %v239
    %v241 = vrot.slane %v231, %v240
    %v242 = vcombine.high %v241, %v241
    %v244 = vunpack.c.l.s4 1966171168
    %v245 = vunpack.c.0.s8 %v244
    %v246 = vlaneseq
    %v247 = vshrl.u32 %v246, 7
    %v248 = vsub.s32 %v245, %v247
    %v249 = vrot.slane %v241, %v248
    %v251 = vunpack.c.l.s4 1966171168
    %v252 = vunpack.c.0.s8 %v251
    %v253 = vlaneseq
    %v254 = vshrl.u32 %v253, 7
    %v255 = vsub.s32 %v252, %v254
    %v256 = vrot.slane %v242, %v255
    %v257 = vlaneseq
    %v258 = vshrl.u32 %v257, 7
    %v259 = vsub.s32 0, %v258
    %v260 = vrot.slane %v249, %v259
    %v261 = vlaneseq
    %v262 = vshrl.u32 %v261, 7
    %v263 = vsub.s32 0, %v262
    %v264 = vrot.slane %v256, %v263
    %v267 = vadd.f32 %v143, %v260
    %v268 = vadd.f32 %v148, %v264
    %v269 = vmax.f32 %v267, 0.0
    %v270 = vmax.f32 %v268, 0.0
    %v271 = vld [vmem:[%s5] sm:$0x1]
    %v273 = vlaneseq
    %v274 = vshrl.u32 %v273, 7
    %v275 = vsub.s32 0, %v274
    %v276 = vrot.slane %v271, %v275
    %v278 = vmul.f32 %v269, %v276
    %v279 = vmul.f32 %v270, %v276
    %vm280 = vcmask 261120
    %v281 = vsel %vm280, %v278, 0.0
    %282 = vadd.xlane.f32.xlu0 %v281
    %v283 = vpop.xlane.xlu0 %282
    %v284 = vsel %vm280, %v279, 0.0
    %285 = vadd.xlane.f32.xlu0 %v284
    %v286 = vpop.xlane.xlu0 %285
    %v289 = vlaneseq
    %v290 = vand.u32 %v289, 127
    %v291 = vlaneseq
    %v292 = vshrl.u32 %v291, 7
    %v293 = vsub.s32 %v290, %v292
    %v294 = vrot.slane %v283, %v293
    %v295 = vlaneseq
    %v296 = vshrl.u32 %v295, 7
    %v297 = vsub.s32 %v290, %v296
    %v298 = vrot.slane %v286, %v297
    %vm299 = vcmask 1041409
    %v300 = vsel %vm299, %v298, %v294
    %vm302 = vcmask 58368
    %v303 = vsel %vm302, %v300, -inf
    %304 = vmax.xlane.f32.xlu0 %v303
    %v305 = vpop.xlane.xlu0 %304
    %v307 = vlaneseq
    %v308 = vshrl.u32 %v307, 7
    %v309 = vsub.s32 0, %v308
    %v310 = vrot.slane %v305, %v309
    %v311 = vlaneseq
    %v312 = vshrl.u32 %v311, 7
    %v313 = vsub.s32 1, %v312
    %v314 = vrot.slane %v305, %v313
    %v317 = vsub.f32 %v283, %v310
    %v318 = vsub.f32 %v286, %v314
    %v319 = vmul.f32 %v317, 1.442695
    %v320 = vpow.pop %v319
    %v321 = vmul.f32 %v318, 1.442695
    %v322 = vpow.pop %v321
    %325 = vset.pattern.permute.xlu0 0
    %326 = vperm.xlu0 %325, %v320
    %v327 = vpop.permute.xlu0 %326
    %328 = vset.pattern.permute.xlu0 0
    %329 = vperm.xlu0 %328, %v322
    %v330 = vpop.permute.xlu0 %329
    %v331 = vlaneseq
    %v332 = vshrl.u32 %v331, 7
    %v333 = vsub.s32 %v290, %v332
    %v334 = vrot.slane %v327, %v333
    %v335 = vlaneseq
    %v336 = vshrl.u32 %v335, 7
    %v337 = vsub.s32 %v290, %v336
    %v338 = vrot.slane %v330, %v337
    %v339 = vsel %vm299, %v338, %v334
    %v341 = vsel %vm302, %v339, 0.0
    %342 = vadd.xlane.f32.xlu0 %v341
    %v343 = vpop.xlane.xlu0 %342
    %v345 = vlaneseq
    %v346 = vshrl.u32 %v345, 7
    %v347 = vsub.s32 0, %v346
    %v348 = vrot.slane %v343, %v347
    %v349 = vlaneseq
    %v350 = vshrl.u32 %v349, 7
    %v351 = vsub.s32 1, %v350
    %v352 = vrot.slane %v343, %v351
    %v355 = vrcp.pop %v348
    %v356 = vmul.f32 %v320, %v355
    %v357 = vrcp.pop %v352
    %v358 = vmul.f32 %v322, %v357
    %361 = vset.pattern.permute.xlu0 0
    %362 = vperm.xlu0 %361, %v356
    %v363 = vpop.permute.xlu0 %362
    %364 = vset.pattern.permute.xlu0 0
    %365 = vperm.xlu0 %364, %v358
    %v366 = vpop.permute.xlu0 %365
    %v367 = vlaneseq
    %v368 = vshrl.u32 %v367, 7
    %v369 = vsub.s32 %v290, %v368
    %v370 = vrot.slane %v363, %v369
    %v371 = vlaneseq
    %v372 = vshrl.u32 %v371, 7
    %v373 = vsub.s32 %v290, %v372
    %v374 = vrot.slane %v366, %v373
    %v375 = vsel %vm299, %v374, %v370
    %377 = vst.msk [vmem:[#allocation8] sm:$0x3] %vm302, %v375
    // Predicated region
    $region38: #{tpu_custom_call.1} parent=1 // pred_check
      _
    $region39: #{tpu_custom_call.1} parent=1 // pred_check_branch
      %379 = sbr.rel (0) target = $region41
    $region40: #{tpu_custom_call.1} parent=1 // pred_region
      %s381 = ssub.s32 32, 32
      %382 = vsyncadd [#allocation4], %s381
      %s384 = sshll.u32 [#allocation8], 4
      %s385 = int_to_ptr.vmem [resolvable:$true] %s384
      %387 = dma.vmem_to_hbm [thread:$0]  %s385, 32, %s6, [#allocation4]
    $region41: #{tpu_custom_call.1} parent=1 // pred_fallthru
      _
    // Predicated region
    $region42: #{tpu_custom_call.1} parent=1 // pred_check
      _
    $region43: #{tpu_custom_call.1} parent=1 // pred_check_branch
      %389 = sbr.rel (0) target = $region45
    $region44: #{tpu_custom_call.1} parent=1 // pred_region
      %390 = dma.done [#allocation4], 32
    $region45: #{tpu_custom_call.1} parent=1 // pred_fallthru
      _
    %391 = vsyncpa [#allocation3], 1
    %392 = vsyncpa [#allocation6], 1
    %393 = vsyncpa [#allocation4], 1

</llo_original>
